<compile_context>
chip_gen: v6e
topology: v6e:2x2x1
jax: 0.10.0
libtpu: 0.0.40
codegen_flags: <defaults>
</compile_context>

<pallas_src>
import functools

import numpy as np

import jax
import jax.numpy as jnp
from jax.experimental import pallas as pl
from jax.experimental.pallas import tpu as pltpu


def _im2col_kernel(x_ref, m_ref, o_ref, *, k, d, pad, H, W):
    # x_ref: (TILE_NC, H*W)        flattened (n, c) planes, lane-dense
    # m_ref: (k*k, H*W)            per-tap 0/1 validity masks (compile-time data)
    # o_ref: (TILE_NC, k*k, H*W)   all dilated taps for these planes
    HW = H * W
    x = x_ref[...]  # hoisted load, reused by every tap
    for i in range(k):
        ri = i * d - pad
        for j in range(k):
            rj = j * d - pad
            t = i * k + j
            s = ri * W + rj                       # want out[p] = x[p + s] (flat index)
            if s == 0:
                shifted = x
            else:
                # circular lane rotation per plane; wrapped elements are killed by mask
                shifted = pltpu.roll(x, shift=(-s) % HW, axis=1)
            mask = m_ref[t:t + 1, :]              # (1, HW) -> broadcasts over sublanes
            o_ref[:, t, :] = shifted * mask


def _choose_tile_nc(NC, HW, ksq, itemsize):
    """Largest NC-plane batch per grid step that fits a conservative VMEM budget
    (double-buffered input + k^2-amplified output), stays sublane-friendly, and
    keeps >= 2 grid steps for megacore sharding when possible."""
    budget = 8 * 1024 * 1024                      # bytes per pipeline buffer set
    per_plane = (1 + ksq) * HW * itemsize         # input + all-tap output, per plane
    tile = max(1, min(NC, budget // per_plane, 256))
    sub = 8 * max(1, 4 // itemsize)               # 8 (f32) / 16 (bf16) / 32 (i8) sublanes
    if NC >= sub:
        tile = max(sub, (tile // sub) * sub)
        while tile > sub and pl.cdiv(NC, tile) < 2:
            tile -= sub
    else:
        tile = NC
    return int(tile)


def im2col_pallas(x, k, d=2, is5D=True):
    """Equivalent of im2col_layer(k, d, is5D).forward(x) for NCHW input x."""
    N, C, H, W = x.shape
    if (d * (k - 1)) % 2 != 0:
        # PyTorch module's .view(N, C, k*k, H, W) itself requires "same" output size.
        raise ValueError("d*(k-1) must be even so the spatial size is preserved.")
    pad = d * (k - 1) // 2
    NC, HW, ksq = N * C, H * W, k * k

    x_flat = x.reshape(NC, HW)                    # free reshape (contiguous)

    # Per-tap validity masks (built at trace time, passed as a tiny input array).
    p = np.arange(HW)
    hh, ww = p // W, p % W
    masks_np = np.zeros((ksq, HW), dtype=np.float32)
    for i in range(k):
        ri = i * d - pad
        for j in range(k):
            rj = j * d - pad
            ok = (hh + ri >= 0) & (hh + ri < H) & (ww + rj >= 0) & (ww + rj < W)
            masks_np[i * k + j] = ok
    masks = jnp.asarray(masks_np, dtype=x.dtype)

    tile_nc = _choose_tile_nc(NC, HW, ksq, x.dtype.itemsize)
    grid = (pl.cdiv(NC, tile_nc),)

    kernel = functools.partial(_im2col_kernel, k=k, d=d, pad=pad, H=H, W=W)

    out = pl.pallas_call(
        kernel,
        out_shape=jax.ShapeDtypeStruct((NC, ksq, HW), x.dtype),
        grid=grid,
        in_specs=[
            pl.BlockSpec((tile_nc, HW), lambda m: (m, 0)),
            pl.BlockSpec((ksq, HW), lambda m: (0, 0)),
        ],
        out_specs=pl.BlockSpec((tile_nc, ksq, HW), lambda m: (m, 0, 0)),
        compiler_params=pltpu.CompilerParams(
            dimension_semantics=("parallel",),
            vmem_limit_bytes=32 * 1024 * 1024,
        ),
    )(x_flat, masks)

    if is5D:
        return out.reshape(N, C, ksq, H, W)
    return out.reshape(N, C * ksq, H, W)


def _ref_im2col(x, k, d=2, is5D=True):
    """Pure-JAX reference implementing nn.Unfold semantics (stride=1)."""
    N, C, H, W = x.shape
    pad = d * (k - 1) // 2
    xp = jnp.pad(x, ((0, 0), (0, 0), (pad, pad), (pad, pad)))
    taps = [xp[:, :, i * d:i * d + H, j * d:j * d + W]
            for i in range(k) for j in range(k)]
    out = jnp.stack(taps, axis=2)                 # (N, C, k*k, H, W)
    if is5D:
        return out
    return out.reshape(N, C * k * k, H, W)


if __name__ == "__main__":
    key = jax.random.PRNGKey(0)

    # Primary case (matches the module's intended use): k=3, d=2 -> pad=2.
    N, C, H, W = 2, 4, 16, 16
    k, d = 3, 2
    x = jax.random.normal(key, (N, C, H, W), dtype=jnp.float32)

    out5 = im2col_pallas(x, k, d, is5D=True)
    jax.block_until_ready(out5)
    ref5 = _ref_im2col(x, k, d, is5D=True)
    assert out5.shape == (N, C, k * k, H, W), out5.shape
    assert jnp.allclose(out5, ref5), "5D output mismatch"

    out4 = im2col_pallas(x, k, d, is5D=False)
    jax.block_until_ready(out4)
    ref4 = _ref_im2col(x, k, d, is5D=False)
    assert out4.shape == (N, C * k * k, H, W), out4.shape
    assert jnp.allclose(out4, ref4), "4D output mismatch"

    # Second case exercising a multi-step grid (NC=16 -> TILE_NC=8, grid=2) and d=1.
    N2, C2 = 2, 8
    k2, d2 = 3, 1
    x2 = jax.random.normal(jax.random.PRNGKey(1), (N2, C2, H, W), dtype=jnp.float32)
    out2 = im2col_pallas(x2, k2, d2, is5D=True)
    jax.block_until_ready(out2)
    ref2 = _ref_im2col(x2, k2, d2, is5D=True)
    assert jnp.allclose(out2, ref2), "multi-step grid output mismatch"

    print("KERNEL_OK")
</pallas_src>

<mosaic_0001>
module attributes {stable_mosaic.version = 11 : i64} {
  func.func @_im2col_kernel(%arg0: i32, %arg1: memref<8x256xf32, #tpu.memory_space<vmem>>, %arg2: memref<9x256xf32, #tpu.memory_space<vmem>>, %arg3: memref<8x9x256xf32, #tpu.memory_space<vmem>>) attributes {dimension_semantics = [#tpu.dimension_semantics<parallel>], iteration_bounds = array<i64: 1>, scalar_prefetch = 0 : i64, scratch_operands = 0 : i64, tpu.core_type = #tpu.core_type<tc>, window_params = [{transform_indices = @transform_0, window_bounds = array<i64: 8, 256>}, {pipeline_mode = #tpu.pipeline_mode<synchronous>, transform_indices = @transform_1, window_bounds = array<i64: 9, 256>}, {transform_indices = @transform_2, window_bounds = array<i64: 8, 9, 256>}]} {
    %c0 = arith.constant 0 : index
    %c0_0 = arith.constant 0 : index
    %0 = vector.load %arg1[%c0, %c0_0] : memref<8x256xf32, #tpu.memory_space<vmem>>, vector<8x256xf32>
    %c34_i32 = arith.constant 34 : i32
    %1 = tpu.dynamic_rotate %0 by %c34_i32 dim 1 : vector<8x256xf32>, i32 -> vector<8x256xf32>
    %c0_1 = arith.constant 0 : index
    %c0_2 = arith.constant 0 : index
    %2 = vector.load %arg2[%c0_1, %c0_2] : memref<9x256xf32, #tpu.memory_space<vmem>>, vector<1x256xf32>
    %3 = vector.broadcast %2 : vector<1x256xf32> to vector<8x256xf32>
    %4 = arith.mulf %1, %3 : vector<8x256xf32>
    %c0_3 = arith.constant 0 : index
    %c0_4 = arith.constant 0 : index
    %c0_5 = arith.constant 0 : index
    %5 = vector.load %arg3[%c0_3, %c0_4, %c0_5] : memref<8x9x256xf32, #tpu.memory_space<vmem>>, vector<8x1x256xf32>
    %6 = vector.shape_cast %5 : vector<8x1x256xf32> to vector<8x256xf32>
    %7 = vector.shape_cast %4 : vector<8x256xf32> to vector<8x1x256xf32>
    tpu.vector_store %arg3[%c0_3, %c0_4, %c0_5], %7 {strides = array<i32>} : memref<8x9x256xf32, #tpu.memory_space<vmem>>, vector<8x1x256xf32>,
    %c32_i32 = arith.constant 32 : i32
    %8 = tpu.dynamic_rotate %0 by %c32_i32 dim 1 : vector<8x256xf32>, i32 -> vector<8x256xf32>
    %c1 = arith.constant 1 : index
    %c0_6 = arith.constant 0 : index
    %9 = vector.load %arg2[%c1, %c0_6] : memref<9x256xf32, #tpu.memory_space<vmem>>, vector<1x256xf32>
    %10 = vector.broadcast %9 : vector<1x256xf32> to vector<8x256xf32>
    %11 = arith.mulf %8, %10 : vector<8x256xf32>
    %c0_7 = arith.constant 0 : index
    %c1_8 = arith.constant 1 : index
    %c0_9 = arith.constant 0 : index
    %12 = vector.load %arg3[%c0_7, %c1_8, %c0_9] : memref<8x9x256xf32, #tpu.memory_space<vmem>>, vector<8x1x256xf32>
    %13 = vector.shape_cast %12 : vector<8x1x256xf32> to vector<8x256xf32>
    %14 = vector.shape_cast %11 : vector<8x256xf32> to vector<8x1x256xf32>
    tpu.vector_store %arg3[%c0_7, %c1_8, %c0_9], %14 {strides = array<i32>} : memref<8x9x256xf32, #tpu.memory_space<vmem>>, vector<8x1x256xf32>,
    %c30_i32 = arith.constant 30 : i32
    %15 = tpu.dynamic_rotate %0 by %c30_i32 dim 1 : vector<8x256xf32>, i32 -> vector<8x256xf32>
    %c2 = arith.constant 2 : index
    %c0_10 = arith.constant 0 : index
    %16 = vector.load %arg2[%c2, %c0_10] : memref<9x256xf32, #tpu.memory_space<vmem>>, vector<1x256xf32>
    %17 = vector.broadcast %16 : vector<1x256xf32> to vector<8x256xf32>
    %18 = arith.mulf %15, %17 : vector<8x256xf32>
    %c0_11 = arith.constant 0 : index
    %c2_12 = arith.constant 2 : index
    %c0_13 = arith.constant 0 : index
    %19 = vector.load %arg3[%c0_11, %c2_12, %c0_13] : memref<8x9x256xf32, #tpu.memory_space<vmem>>, vector<8x1x256xf32>
    %20 = vector.shape_cast %19 : vector<8x1x256xf32> to vector<8x256xf32>
    %21 = vector.shape_cast %18 : vector<8x256xf32> to vector<8x1x256xf32>
    tpu.vector_store %arg3[%c0_11, %c2_12, %c0_13], %21 {strides = array<i32>} : memref<8x9x256xf32, #tpu.memory_space<vmem>>, vector<8x1x256xf32>,
    %c2_i32 = arith.constant 2 : i32
    %22 = tpu.dynamic_rotate %0 by %c2_i32 dim 1 : vector<8x256xf32>, i32 -> vector<8x256xf32>
    %c3 = arith.constant 3 : index
    %c0_14 = arith.constant 0 : index
    %23 = vector.load %arg2[%c3, %c0_14] : memref<9x256xf32, #tpu.memory_space<vmem>>, vector<1x256xf32>
    %24 = vector.broadcast %23 : vector<1x256xf32> to vector<8x256xf32>
    %25 = arith.mulf %22, %24 : vector<8x256xf32>
    %c0_15 = arith.constant 0 : index
    %c3_16 = arith.constant 3 : index
    %c0_17 = arith.constant 0 : index
    %26 = vector.load %arg3[%c0_15, %c3_16, %c0_17] : memref<8x9x256xf32, #tpu.memory_space<vmem>>, vector<8x1x256xf32>
    %27 = vector.shape_cast %26 : vector<8x1x256xf32> to vector<8x256xf32>
    %28 = vector.shape_cast %25 : vector<8x256xf32> to vector<8x1x256xf32>
    tpu.vector_store %arg3[%c0_15, %c3_16, %c0_17], %28 {strides = array<i32>} : memref<8x9x256xf32, #tpu.memory_space<vmem>>, vector<8x1x256xf32>,
    %c4 = arith.constant 4 : index
    %c0_18 = arith.constant 0 : index
    %29 = vector.load %arg2[%c4, %c0_18] : memref<9x256xf32, #tpu.memory_space<vmem>>, vector<1x256xf32>
    %30 = vector.broadcast %29 : vector<1x256xf32> to vector<8x256xf32>
    %31 = arith.mulf %0, %30 : vector<8x256xf32>
    %c0_19 = arith.constant 0 : index
    %c4_20 = arith.constant 4 : index
    %c0_21 = arith.constant 0 : index
    %32 = vector.load %arg3[%c0_19, %c4_20, %c0_21] : memref<8x9x256xf32, #tpu.memory_space<vmem>>, vector<8x1x256xf32>
    %33 = vector.shape_cast %32 : vector<8x1x256xf32> to vector<8x256xf32>
    %34 = vector.shape_cast %31 : vector<8x256xf32> to vector<8x1x256xf32>
    tpu.vector_store %arg3[%c0_19, %c4_20, %c0_21], %34 {strides = array<i32>} : memref<8x9x256xf32, #tpu.memory_space<vmem>>, vector<8x1x256xf32>,
    %c254_i32 = arith.constant 254 : i32
    %35 = tpu.dynamic_rotate %0 by %c254_i32 dim 1 : vector<8x256xf32>, i32 -> vector<8x256xf32>
    %c5 = arith.constant 5 : index
    %c0_22 = arith.constant 0 : index
    %36 = vector.load %arg2[%c5, %c0_22] : memref<9x256xf32, #tpu.memory_space<vmem>>, vector<1x256xf32>
    %37 = vector.broadcast %36 : vector<1x256xf32> to vector<8x256xf32>
    %38 = arith.mulf %35, %37 : vector<8x256xf32>
    %c0_23 = arith.constant 0 : index
    %c5_24 = arith.constant 5 : index
    %c0_25 = arith.constant 0 : index
    %39 = vector.load %arg3[%c0_23, %c5_24, %c0_25] : memref<8x9x256xf32, #tpu.memory_space<vmem>>, vector<8x1x256xf32>
    %40 = vector.shape_cast %39 : vector<8x1x256xf32> to vector<8x256xf32>
    %41 = vector.shape_cast %38 : vector<8x256xf32> to vector<8x1x256xf32>
    tpu.vector_store %arg3[%c0_23, %c5_24, %c0_25], %41 {strides = array<i32>} : memref<8x9x256xf32, #tpu.memory_space<vmem>>, vector<8x1x256xf32>,
    %c226_i32 = arith.constant 226 : i32
    %42 = tpu.dynamic_rotate %0 by %c226_i32 dim 1 : vector<8x256xf32>, i32 -> vector<8x256xf32>
    %c6 = arith.constant 6 : index
    %c0_26 = arith.constant 0 : index
    %43 = vector.load %arg2[%c6, %c0_26] : memref<9x256xf32, #tpu.memory_space<vmem>>, vector<1x256xf32>
    %44 = vector.broadcast %43 : vector<1x256xf32> to vector<8x256xf32>
    %45 = arith.mulf %42, %44 : vector<8x256xf32>
    %c0_27 = arith.constant 0 : index
    %c6_28 = arith.constant 6 : index
    %c0_29 = arith.constant 0 : index
    %46 = vector.load %arg3[%c0_27, %c6_28, %c0_29] : memref<8x9x256xf32, #tpu.memory_space<vmem>>, vector<8x1x256xf32>
    %47 = vector.shape_cast %46 : vector<8x1x256xf32> to vector<8x256xf32>
    %48 = vector.shape_cast %45 : vector<8x256xf32> to vector<8x1x256xf32>
    tpu.vector_store %arg3[%c0_27, %c6_28, %c0_29], %48 {strides = array<i32>} : memref<8x9x256xf32, #tpu.memory_space<vmem>>, vector<8x1x256xf32>,
    %c224_i32 = arith.constant 224 : i32
    %49 = tpu.dynamic_rotate %0 by %c224_i32 dim 1 : vector<8x256xf32>, i32 -> vector<8x256xf32>
    %c7 = arith.constant 7 : index
    %c0_30 = arith.constant 0 : index
    %50 = vector.load %arg2[%c7, %c0_30] : memref<9x256xf32, #tpu.memory_space<vmem>>, vector<1x256xf32>
    %51 = vector.broadcast %50 : vector<1x256xf32> to vector<8x256xf32>
    %52 = arith.mulf %49, %51 : vector<8x256xf32>
    %c0_31 = arith.constant 0 : index
    %c7_32 = arith.constant 7 : index
    %c0_33 = arith.constant 0 : index
    %53 = vector.load %arg3[%c0_31, %c7_32, %c0_33] : memref<8x9x256xf32, #tpu.memory_space<vmem>>, vector<8x1x256xf32>
    %54 = vector.shape_cast %53 : vector<8x1x256xf32> to vector<8x256xf32>
    %55 = vector.shape_cast %52 : vector<8x256xf32> to vector<8x1x256xf32>
    tpu.vector_store %arg3[%c0_31, %c7_32, %c0_33], %55 {strides = array<i32>} : memref<8x9x256xf32, #tpu.memory_space<vmem>>, vector<8x1x256xf32>,
    %c222_i32 = arith.constant 222 : i32
    %56 = tpu.dynamic_rotate %0 by %c222_i32 dim 1 : vector<8x256xf32>, i32 -> vector<8x256xf32>
    %c8 = arith.constant 8 : index
    %c0_34 = arith.constant 0 : index
    %57 = vector.load %arg2[%c8, %c0_34] : memref<9x256xf32, #tpu.memory_space<vmem>>, vector<1x256xf32>
    %58 = vector.broadcast %57 : vector<1x256xf32> to vector<8x256xf32>
    %59 = arith.mulf %56, %58 : vector<8x256xf32>
    %c0_35 = arith.constant 0 : index
    %c8_36 = arith.constant 8 : index
    %c0_37 = arith.constant 0 : index
    %60 = vector.load %arg3[%c0_35, %c8_36, %c0_37] : memref<8x9x256xf32, #tpu.memory_space<vmem>>, vector<8x1x256xf32>
    %61 = vector.shape_cast %60 : vector<8x1x256xf32> to vector<8x256xf32>
    %62 = vector.shape_cast %59 : vector<8x256xf32> to vector<8x1x256xf32>
    tpu.vector_store %arg3[%c0_35, %c8_36, %c0_37], %62 {strides = array<i32>} : memref<8x9x256xf32, #tpu.memory_space<vmem>>, vector<8x1x256xf32>,
    return
  }
  func.func @transform_0(%arg0: i32) -> (i32, i32) {
    %c0_i32 = arith.constant 0 : i32
    %c0_i32_0 = arith.constant 0 : i32
    return %arg0, %c0_i32 : i32, i32
  }
  func.func @transform_1(%arg0: i32) -> (i32, i32) {
    %c0_i32 = arith.constant 0 : i32
    %c0_i32_0 = arith.constant 0 : i32
    %c0_i32_1 = arith.constant 0 : i32
    return %c0_i32, %c0_i32_0 : i32, i32
  }
  func.func @transform_2(%arg0: i32) -> (i32, i32, i32) {
    %c0_i32 = arith.constant 0 : i32
    %c0_i32_0 = arith.constant 0 : i32
    %c0_i32_1 = arith.constant 0 : i32
    return %arg0, %c0_i32, %c0_i32_0 : i32, i32, i32
  }
}

</mosaic_0001>

<llo_original>
// kernel: tpu_custom_call.1
$region0: #{tpu_custom_call.1}
  #allocation0 [shape = 'u32[]', space=smem, size = 0x4, offset = 0x4, fixed_abs, tag = 'smem constant byte address 0x4 - core index']
  #allocation1 [shape = 'u32[144,128]{1,0:T(1,128)}', space=vmem, size = 0x12000, scoped, tag = 'internal scratch']
  %s0 = inlined_call_operand.hbm [shape: f32[8,256], index: 0, kind: input, shape index: {}]
  %s1 = inlined_call_operand.hbm [shape: f32[9,256], index: 1, kind: input, shape index: {}]
  %s2 = inlined_call_operand.vmem [shape: f32[8,9,256], index: 2, kind: output, shape index: {}]
  %s3 = sld [smem:[#allocation0]]
  $region26: #{tpu_custom_call.1} parent=0
    _
  %s5 = ssub.s32 1, %s3
  %s6 = scalar_select 0, %s5, %s3
  $region1: #{tpu_custom_call.1} parent=0
    #allocation2 [shape = 'u8[8192]{0}', space=vmem, size = 0x2000, scoped, tag = 'input window, operand 0, single buffered']
    #allocation3 [shape = 's32[1]{0}', space=sflag, size = 0x4, scoped, tag = 'scoped memory for tpu_custom_call.1']
    #allocation4 [shape = 'u8[16384]{0}', space=vmem, size = 0x4000, scoped, tag = 'input window, operand 1, single buffered']
    #allocation5 [shape = 's32[1]{0}', space=sflag, size = 0x4, scoped, tag = 'scoped memory for tpu_custom_call.1']
    %7 = vsyncpa [#allocation3], 0
    %8 = vsyncpa [#allocation5], 0
    // Predicated region
    $region2: #{tpu_custom_call.1} parent=1 // pred_check
      _
    $region3: #{tpu_custom_call.1} parent=1 // pred_check_branch
      %10 = sbr.rel (0) target = $region5
    $region4: #{tpu_custom_call.1} parent=1 // pred_region
      %s12 = ssub.s32 256, 256
      %13 = vsyncadd [#allocation3], %s12
      %s15 = sshll.u32 [#allocation2], 4
      %s16 = int_to_ptr.vmem [resolvable:$true] %s15
      %18 = dma.hbm_to_vmem [thread:$0]  %s0, 256, %s16, [#allocation3]
    $region5: #{tpu_custom_call.1} parent=1 // pred_fallthru
      _
    // Predicated region
    $region6: #{tpu_custom_call.1} parent=1 // pred_check
      _
    $region7: #{tpu_custom_call.1} parent=1 // pred_check_branch
      %20 = sbr.rel (0) target = $region9
    $region8: #{tpu_custom_call.1} parent=1 // pred_region
      %s22 = ssub.s32 512, 512
      %23 = vsyncadd [#allocation5], %s22
      %s24 = sshll.u32 [#allocation4], 4
      %s25 = int_to_ptr.vmem [resolvable:$true] %s24
      %30 = dma.hbm_to_vmem [thread:$0]  %s1, 512, %s25, [#allocation5], 256, 256, 16
    $region9: #{tpu_custom_call.1} parent=1 // pred_fallthru
      _
    // Predicated region
    $region10: #{tpu_custom_call.1} parent=1 // pred_check
      _
    $region11: #{tpu_custom_call.1} parent=1 // pred_check_branch
      %32 = sbr.rel (0) target = $region13
    $region12: #{tpu_custom_call.1} parent=1 // pred_region
      %33 = dma.done [#allocation3], 256
    $region13: #{tpu_custom_call.1} parent=1 // pred_fallthru
      _
    // Predicated region
    $region14: #{tpu_custom_call.1} parent=1 // pred_check
      _
    $region15: #{tpu_custom_call.1} parent=1 // pred_check_branch
      %35 = sbr.rel (0) target = $region17
    $region16: #{tpu_custom_call.1} parent=1 // pred_region
      %36 = dma.done [#allocation5], 512
    $region17: #{tpu_custom_call.1} parent=1 // pred_fallthru
      _
    %v37 = vld [vmem:[#allocation2] sm:$0xff]
    %v38 = vld [vmem:[#allocation2 + $0x8] sm:$0xff]
    %39 = vrot.lane.b32.xlu0 %v37, 34
    %v40 = vpop.permute.xlu0 %39
    %41 = vrot.lane.b32.xlu0 %v38, 34
    %v42 = vpop.permute.xlu0 %41
    %v43 = vlaneseq
    %v44 = vand.u32 %v43, 127
    %vm45 = vcmp.lt.s32.totalorder %v44, 34
    %v46 = vsel %vm45, %v40, %v42
    %v47 = vsel %vm45, %v42, %v40
    %v48 = vld [vmem:[#allocation4] ss:$8 sm:$0x3]
    %v50 = vlaneseq
    %v51 = vshrl.u32 %v50, 7
    %v52 = vsub.s32 0, %v51
    %v53 = vrot.slane %v48, %v52
    %v54 = vlaneseq
    %v55 = vshrl.u32 %v54, 7
    %v56 = vsub.s32 1, %v55
    %v57 = vrot.slane %v48, %v56
    %v60 = vmul.f32 %v47, %v53
    %v61 = vmul.f32 %v46, %v57
    %v64 = vcombine.low %v60, %v61
    %v65 = vcombine.high %v60, %v61
    %v67 = vunpack.c.l.s4 1966171168
    %v68 = vunpack.c.0.s8 %v67
    %v69 = vlaneseq
    %v70 = vshrl.u32 %v69, 7
    %v71 = vsub.s32 %v68, %v70
    %v72 = vrot.slane %v64, %v71
    %v74 = vunpack.c.l.s4 1966171168
    %v75 = vunpack.c.0.s8 %v74
    %v76 = vlaneseq
    %v77 = vshrl.u32 %v76, 7
    %v78 = vsub.s32 %v75, %v77
    %v79 = vrot.slane %v65, %v78
    %v80 = vcombine.high %v72, %v72
    %v81 = vcombine.high %v79, %v79
    %v83 = vunpack.c.l.s4 1966171168
    %v84 = vunpack.c.0.s8 %v83
    %v85 = vlaneseq
    %v86 = vshrl.u32 %v85, 7
    %v87 = vsub.s32 %v84, %v86
    %v88 = vrot.slane %v72, %v87
    %v90 = vunpack.c.l.s4 1966171168
    %v91 = vunpack.c.0.s8 %v90
    %v92 = vlaneseq
    %v93 = vshrl.u32 %v92, 7
    %v94 = vsub.s32 %v91, %v93
    %v95 = vrot.slane %v79, %v94
    %v97 = vunpack.c.l.s4 1966171168
    %v98 = vunpack.c.0.s8 %v97
    %v99 = vlaneseq
    %v100 = vshrl.u32 %v99, 7
    %v101 = vsub.s32 %v98, %v100
    %v102 = vrot.slane %v80, %v101
    %v104 = vunpack.c.l.s4 1966171168
    %v105 = vunpack.c.0.s8 %v104
    %v106 = vlaneseq
    %v107 = vshrl.u32 %v106, 7
    %v108 = vsub.s32 %v105, %v107
    %v109 = vrot.slane %v81, %v108
    %v110 = vcombine.high %v88, %v88
    %v111 = vcombine.high %v95, %v95
    %v112 = vcombine.high %v102, %v102
    %v113 = vcombine.high %v109, %v109
    %v122 = vlaneseq
    %vm123 = vcmp.ge.s32.totalorder %v122, 0
    %vm124 = vcmp.lt.s32.totalorder %v122, 256
    %vm125 = vmand %vm123, %vm124
    %126 = vst.msk [vmem:[%s2] ss:$8 sm:$0x3] %vm125, %v88
    %127 = vst.msk [vmem:[%s2] ss:$8 sm:$0x0] %vm125, %v88
    %s128 = scalar_lea.vmem %s2, 32
    %129 = vst.msk [vmem:[%s128] ss:$8 sm:$0x3] %vm125, %v102
    %130 = vst.msk [vmem:[%s128] ss:$8 sm:$0x0] %vm125, %v102
    %s131 = scalar_lea.vmem %s2, 64
    %132 = vst.msk [vmem:[%s131] ss:$8 sm:$0x3] %vm125, %v110
    %133 = vst.msk [vmem:[%s131] ss:$8 sm:$0x0] %vm125, %v110
    %s134 = scalar_lea.vmem %s2, 96
    %135 = vst.msk [vmem:[%s134] ss:$8 sm:$0x3] %vm125, %v112
    %136 = vst.msk [vmem:[%s134] ss:$8 sm:$0x0] %vm125, %v112
    %s137 = scalar_lea.vmem %s2, 128
    %138 = vst.msk [vmem:[%s137] ss:$8 sm:$0x3] %vm125, %v95
    %139 = vst.msk [vmem:[%s137] ss:$8 sm:$0x0] %vm125, %v95
    %s140 = scalar_lea.vmem %s2, 160
    %141 = vst.msk [vmem:[%s140] ss:$8 sm:$0x3] %vm125, %v109
    %142 = vst.msk [vmem:[%s140] ss:$8 sm:$0x0] %vm125, %v109
    %s143 = scalar_lea.vmem %s2, 192
    %144 = vst.msk [vmem:[%s143] ss:$8 sm:$0x3] %vm125, %v111
    %145 = vst.msk [vmem:[%s143] ss:$8 sm:$0x0] %vm125, %v111
    %s146 = scalar_lea.vmem %s2, 224
    %147 = vst.msk [vmem:[%s146] ss:$8 sm:$0x3] %vm125, %v113
    %148 = vst.msk [vmem:[%s146] ss:$8 sm:$0x0] %vm125, %v113
    %149 = vrot.lane.b32.xlu0 %v37, 32
    %v150 = vpop.permute.xlu0 %149
    %151 = vrot.lane.b32.xlu0 %v38, 32
    %v152 = vpop.permute.xlu0 %151
    %vm153 = vcmp.lt.s32.totalorder %v44, 32
    %v154 = vsel %vm153, %v150, %v152
    %v155 = vsel %vm153, %v152, %v150
    %s156 = scalar_lea.vmem [#allocation4], 1
    %v157 = vld [vmem:[%s156] ss:$8 sm:$0x3]
    %v159 = vlaneseq
    %v160 = vshrl.u32 %v159, 7
    %v161 = vsub.s32 0, %v160
    %v162 = vrot.slane %v157, %v161
    %v163 = vlaneseq
    %v164 = vshrl.u32 %v163, 7
    %v165 = vsub.s32 1, %v164
    %v166 = vrot.slane %v157, %v165
    %v169 = vmul.f32 %v155, %v162
    %v170 = vmul.f32 %v154, %v166
    %v173 = vcombine.low %v169, %v170
    %v174 = vcombine.high %v169, %v170
    %v176 = vunpack.c.l.s4 1966171168
    %v177 = vunpack.c.0.s8 %v176
    %v178 = vlaneseq
    %v179 = vshrl.u32 %v178, 7
    %v180 = vsub.s32 %v177, %v179
    %v181 = vrot.slane %v173, %v180
    %v183 = vunpack.c.l.s4 1966171168
    %v184 = vunpack.c.0.s8 %v183
    %v185 = vlaneseq
    %v186 = vshrl.u32 %v185, 7
    %v187 = vsub.s32 %v184, %v186
    %v188 = vrot.slane %v174, %v187
    %v189 = vcombine.high %v181, %v181
    %v190 = vcombine.high %v188, %v188
    %v192 = vunpack.c.l.s4 1966171168
    %v193 = vunpack.c.0.s8 %v192
    %v194 = vlaneseq
    %v195 = vshrl.u32 %v194, 7
    %v196 = vsub.s32 %v193, %v195
    %v197 = vrot.slane %v181, %v196
    %v199 = vunpack.c.l.s4 1966171168
    %v200 = vunpack.c.0.s8 %v199
    %v201 = vlaneseq
    %v202 = vshrl.u32 %v201, 7
    %v203 = vsub.s32 %v200, %v202
    %v204 = vrot.slane %v188, %v203
    %v206 = vunpack.c.l.s4 1966171168
    %v207 = vunpack.c.0.s8 %v206
    %v208 = vlaneseq
    %v209 = vshrl.u32 %v208, 7
    %v210 = vsub.s32 %v207, %v209
    %v211 = vrot.slane %v189, %v210
    %v213 = vunpack.c.l.s4 1966171168
    %v214 = vunpack.c.0.s8 %v213
    %v215 = vlaneseq
    %v216 = vshrl.u32 %v215, 7
    %v217 = vsub.s32 %v214, %v216
    %v218 = vrot.slane %v190, %v217
    %v219 = vcombine.high %v197, %v197
    %v220 = vcombine.high %v204, %v204
    %v221 = vcombine.high %v211, %v211
    %v222 = vcombine.high %v218, %v218
    %s231 = scalar_lea.vmem %s2, 1
    %232 = vst.msk [vmem:[%s231] ss:$8 sm:$0x3] %vm125, %v197
    %233 = vst.msk [vmem:[%s231] ss:$8 sm:$0x0] %vm125, %v197
    %s234 = scalar_lea.vmem %s2, 33
    %235 = vst.msk [vmem:[%s234] ss:$8 sm:$0x3] %vm125, %v211
    %236 = vst.msk [vmem:[%s234] ss:$8 sm:$0x0] %vm125, %v211
    %s237 = scalar_lea.vmem %s2, 65
    %238 = vst.msk [vmem:[%s237] ss:$8 sm:$0x3] %vm125, %v219
    %239 = vst.msk [vmem:[%s237] ss:$8 sm:$0x0] %vm125, %v219
    %s240 = scalar_lea.vmem %s2, 97
    %241 = vst.msk [vmem:[%s240] ss:$8 sm:$0x3] %vm125, %v221
    %242 = vst.msk [vmem:[%s240] ss:$8 sm:$0x0] %vm125, %v221
    %s243 = scalar_lea.vmem %s2, 129
    %244 = vst.msk [vmem:[%s243] ss:$8 sm:$0x3] %vm125, %v204
    %245 = vst.msk [vmem:[%s243] ss:$8 sm:$0x0] %vm125, %v204
    %s246 = scalar_lea.vmem %s2, 161
    %247 = vst.msk [vmem:[%s246] ss:$8 sm:$0x3] %vm125, %v218
    %248 = vst.msk [vmem:[%s246] ss:$8 sm:$0x0] %vm125, %v218
    %s249 = scalar_lea.vmem %s2, 193
    %250 = vst.msk [vmem:[%s249] ss:$8 sm:$0x3] %vm125, %v220
    %251 = vst.msk [vmem:[%s249] ss:$8 sm:$0x0] %vm125, %v220
    %s252 = scalar_lea.vmem %s2, 225
    %253 = vst.msk [vmem:[%s252] ss:$8 sm:$0x3] %vm125, %v222
    %254 = vst.msk [vmem:[%s252] ss:$8 sm:$0x0] %vm125, %v222
    %255 = vrot.lane.b32.xlu0 %v37, 30
    %v256 = vpop.permute.xlu0 %255
    %257 = vrot.lane.b32.xlu0 %v38, 30
    %v258 = vpop.permute.xlu0 %257
    %vm259 = vcmp.lt.s32.totalorder %v44, 30
    %v260 = vsel %vm259, %v256, %v258
    %v261 = vsel %vm259, %v258, %v256
    %s262 = scalar_lea.vmem [#allocation4], 2
    %v263 = vld [vmem:[%s262] ss:$8 sm:$0x3]
    %v265 = vlaneseq
    %v266 = vshrl.u32 %v265, 7
    %v267 = vsub.s32 0, %v266
    %v268 = vrot.slane %v263, %v267
    %v269 = vlaneseq
    %v270 = vshrl.u32 %v269, 7
    %v271 = vsub.s32 1, %v270
    %v272 = vrot.slane %v263, %v271
    %v275 = vmul.f32 %v261, %v268
    %v276 = vmul.f32 %v260, %v272
    %v279 = vcombine.low %v275, %v276
    %v280 = vcombine.high %v275, %v276
    %v282 = vunpack.c.l.s4 1966171168
    %v283 = vunpack.c.0.s8 %v282
    %v284 = vlaneseq
    %v285 = vshrl.u32 %v284, 7
    %v286 = vsub.s32 %v283, %v285
    %v287 = vrot.slane %v279, %v286
    %v289 = vunpack.c.l.s4 1966171168
    %v290 = vunpack.c.0.s8 %v289
    %v291 = vlaneseq
    %v292 = vshrl.u32 %v291, 7
    %v293 = vsub.s32 %v290, %v292
    %v294 = vrot.slane %v280, %v293
    %v295 = vcombine.high %v287, %v287
    %v296 = vcombine.high %v294, %v294
    %v298 = vunpack.c.l.s4 1966171168
    %v299 = vunpack.c.0.s8 %v298
    %v300 = vlaneseq
    %v301 = vshrl.u32 %v300, 7
    %v302 = vsub.s32 %v299, %v301
    %v303 = vrot.slane %v287, %v302
    %v305 = vunpack.c.l.s4 1966171168
    %v306 = vunpack.c.0.s8 %v305
    %v307 = vlaneseq
    %v308 = vshrl.u32 %v307, 7
    %v309 = vsub.s32 %v306, %v308
    %v310 = vrot.slane %v294, %v309
    %v312 = vunpack.c.l.s4 1966171168
    %v313 = vunpack.c.0.s8 %v312
    %v314 = vlaneseq
    %v315 = vshrl.u32 %v314, 7
    %v316 = vsub.s32 %v313, %v315
    %v317 = vrot.slane %v295, %v316
    %v319 = vunpack.c.l.s4 1966171168
    %v320 = vunpack.c.0.s8 %v319
    %v321 = vlaneseq
    %v322 = vshrl.u32 %v321, 7
    %v323 = vsub.s32 %v320, %v322
    %v324 = vrot.slane %v296, %v323
    %v325 = vcombine.high %v303, %v303
    %v326 = vcombine.high %v310, %v310
    %v327 = vcombine.high %v317, %v317
    %v328 = vcombine.high %v324, %v324
    %s337 = scalar_lea.vmem %s2, 2
    %338 = vst.msk [vmem:[%s337] ss:$8 sm:$0x3] %vm125, %v303
    %339 = vst.msk [vmem:[%s337] ss:$8 sm:$0x0] %vm125, %v303
    %s340 = scalar_lea.vmem %s2, 34
    %341 = vst.msk [vmem:[%s340] ss:$8 sm:$0x3] %vm125, %v317
    %342 = vst.msk [vmem:[%s340] ss:$8 sm:$0x0] %vm125, %v317
    %s343 = scalar_lea.vmem %s2, 66
    %344 = vst.msk [vmem:[%s343] ss:$8 sm:$0x3] %vm125, %v325
    %345 = vst.msk [vmem:[%s343] ss:$8 sm:$0x0] %vm125, %v325
    %s346 = scalar_lea.vmem %s2, 98
    %347 = vst.msk [vmem:[%s346] ss:$8 sm:$0x3] %vm125, %v327
    %348 = vst.msk [vmem:[%s346] ss:$8 sm:$0x0] %vm125, %v327
    %s349 = scalar_lea.vmem %s2, 130
    %350 = vst.msk [vmem:[%s349] ss:$8 sm:$0x3] %vm125, %v310
    %351 = vst.msk [vmem:[%s349] ss:$8 sm:$0x0] %vm125, %v310
    %s352 = scalar_lea.vmem %s2, 162
    %353 = vst.msk [vmem:[%s352] ss:$8 sm:$0x3] %vm125, %v324
    %354 = vst.msk [vmem:[%s352] ss:$8 sm:$0x0] %vm125, %v324
    %s355 = scalar_lea.vmem %s2, 194
    %356 = vst.msk [vmem:[%s355] ss:$8 sm:$0x3] %vm125, %v326
    %357 = vst.msk [vmem:[%s355] ss:$8 sm:$0x0] %vm125, %v326
    %s358 = scalar_lea.vmem %s2, 226
    %359 = vst.msk [vmem:[%s358] ss:$8 sm:$0x3] %vm125, %v328
    %360 = vst.msk [vmem:[%s358] ss:$8 sm:$0x0] %vm125, %v328
    %361 = vrot.lane.b32.xlu0 %v37, 2
    %v362 = vpop.permute.xlu0 %361
    %363 = vrot.lane.b32.xlu0 %v38, 2
    %v364 = vpop.permute.xlu0 %363
    %vm365 = vcmp.lt.s32.totalorder %v44, 2
    %v366 = vsel %vm365, %v362, %v364
    %v367 = vsel %vm365, %v364, %v362
    %s368 = scalar_lea.vmem [#allocation4], 3
    %v369 = vld [vmem:[%s368] ss:$8 sm:$0x3]
    %v371 = vlaneseq
    %v372 = vshrl.u32 %v371, 7
    %v373 = vsub.s32 0, %v372
    %v374 = vrot.slane %v369, %v373
    %v375 = vlaneseq
    %v376 = vshrl.u32 %v375, 7
    %v377 = vsub.s32 1, %v376
    %v378 = vrot.slane %v369, %v377
    %v381 = vmul.f32 %v367, %v374
    %v382 = vmul.f32 %v366, %v378
    %v385 = vcombine.low %v381, %v382
    %v386 = vcombine.high %v381, %v382
    %v388 = vunpack.c.l.s4 1966171168
    %v389 = vunpack.c.0.s8 %v388
    %v390 = vlaneseq
    %v391 = vshrl.u32 %v390, 7
    %v392 = vsub.s32 %v389, %v391
    %v393 = vrot.slane %v385, %v392
    %v395 = vunpack.c.l.s4 1966171168
    %v396 = vunpack.c.0.s8 %v395
    %v397 = vlaneseq
    %v398 = vshrl.u32 %v397, 7
    %v399 = vsub.s32 %v396, %v398
    %v400 = vrot.slane %v386, %v399
    %v401 = vcombine.high %v393, %v393
    %v402 = vcombine.high %v400, %v400
    %v404 = vunpack.c.l.s4 1966171168
    %v405 = vunpack.c.0.s8 %v404
    %v406 = vlaneseq
    %v407 = vshrl.u32 %v406, 7
    %v408 = vsub.s32 %v405, %v407
    %v409 = vrot.slane %v393, %v408
    %v411 = vunpack.c.l.s4 1966171168
    %v412 = vunpack.c.0.s8 %v411
    %v413 = vlaneseq
    %v414 = vshrl.u32 %v413, 7
    %v415 = vsub.s32 %v412, %v414
    %v416 = vrot.slane %v400, %v415
    %v418 = vunpack.c.l.s4 1966171168
    %v419 = vunpack.c.0.s8 %v418
    %v420 = vlaneseq
    %v421 = vshrl.u32 %v420, 7
    %v422 = vsub.s32 %v419, %v421
    %v423 = vrot.slane %v401, %v422
    %v425 = vunpack.c.l.s4 1966171168
    %v426 = vunpack.c.0.s8 %v425
    %v427 = vlaneseq
    %v428 = vshrl.u32 %v427, 7
    %v429 = vsub.s32 %v426, %v428
    %v430 = vrot.slane %v402, %v429
    %v431 = vcombine.high %v409, %v409
    %v432 = vcombine.high %v416, %v416
    %v433 = vcombine.high %v423, %v423
    %v434 = vcombine.high %v430, %v430
    %s443 = scalar_lea.vmem %s2, 3
    %444 = vst.msk [vmem:[%s443] ss:$8 sm:$0x3] %vm125, %v409
    %445 = vst.msk [vmem:[%s443] ss:$8 sm:$0x0] %vm125, %v409
    %s446 = scalar_lea.vmem %s2, 35
    %447 = vst.msk [vmem:[%s446] ss:$8 sm:$0x3] %vm125, %v423
    %448 = vst.msk [vmem:[%s446] ss:$8 sm:$0x0] %vm125, %v423
    %s449 = scalar_lea.vmem %s2, 67
    %450 = vst.msk [vmem:[%s449] ss:$8 sm:$0x3] %vm125, %v431
    %451 = vst.msk [vmem:[%s449] ss:$8 sm:$0x0] %vm125, %v431
    %s452 = scalar_lea.vmem %s2, 99
    %453 = vst.msk [vmem:[%s452] ss:$8 sm:$0x3] %vm125, %v433
    %454 = vst.msk [vmem:[%s452] ss:$8 sm:$0x0] %vm125, %v433
    %s455 = scalar_lea.vmem %s2, 131
    %456 = vst.msk [vmem:[%s455] ss:$8 sm:$0x3] %vm125, %v416
    %457 = vst.msk [vmem:[%s455] ss:$8 sm:$0x0] %vm125, %v416
    %s458 = scalar_lea.vmem %s2, 163
    %459 = vst.msk [vmem:[%s458] ss:$8 sm:$0x3] %vm125, %v430
    %460 = vst.msk [vmem:[%s458] ss:$8 sm:$0x0] %vm125, %v430
    %s461 = scalar_lea.vmem %s2, 195
    %462 = vst.msk [vmem:[%s461] ss:$8 sm:$0x3] %vm125, %v432
    %463 = vst.msk [vmem:[%s461] ss:$8 sm:$0x0] %vm125, %v432
    %s464 = scalar_lea.vmem %s2, 227
    %465 = vst.msk [vmem:[%s464] ss:$8 sm:$0x3] %vm125, %v434
    %466 = vst.msk [vmem:[%s464] ss:$8 sm:$0x0] %vm125, %v434
    %s467 = scalar_lea.vmem [#allocation4], 4
    %v468 = vld [vmem:[%s467] ss:$8 sm:$0x3]
    %v470 = vlaneseq
    %v471 = vshrl.u32 %v470, 7
    %v472 = vsub.s32 0, %v471
    %v473 = vrot.slane %v468, %v472
    %v474 = vlaneseq
    %v475 = vshrl.u32 %v474, 7
    %v476 = vsub.s32 1, %v475
    %v477 = vrot.slane %v468, %v476
    %v480 = vmul.f32 %v37, %v473
    %v481 = vmul.f32 %v38, %v477
    %v484 = vcombine.low %v480, %v481
    %v485 = vcombine.high %v480, %v481
    %v487 = vunpack.c.l.s4 1966171168
    %v488 = vunpack.c.0.s8 %v487
    %v489 = vlaneseq
    %v490 = vshrl.u32 %v489, 7
    %v491 = vsub.s32 %v488, %v490
    %v492 = vrot.slane %v484, %v491
    %v494 = vunpack.c.l.s4 1966171168
    %v495 = vunpack.c.0.s8 %v494
    %v496 = vlaneseq
    %v497 = vshrl.u32 %v496, 7
    %v498 = vsub.s32 %v495, %v497
    %v499 = vrot.slane %v485, %v498
    %v500 = vcombine.high %v492, %v492
    %v501 = vcombine.high %v499, %v499
    %v503 = vunpack.c.l.s4 1966171168
    %v504 = vunpack.c.0.s8 %v503
    %v505 = vlaneseq
    %v506 = vshrl.u32 %v505, 7
    %v507 = vsub.s32 %v504, %v506
    %v508 = vrot.slane %v492, %v507
    %v510 = vunpack.c.l.s4 1966171168
    %v511 = vunpack.c.0.s8 %v510
    %v512 = vlaneseq
    %v513 = vshrl.u32 %v512, 7
    %v514 = vsub.s32 %v511, %v513
    %v515 = vrot.slane %v499, %v514
    %v517 = vunpack.c.l.s4 1966171168
    %v518 = vunpack.c.0.s8 %v517
    %v519 = vlaneseq
    %v520 = vshrl.u32 %v519, 7
    %v521 = vsub.s32 %v518, %v520
    %v522 = vrot.slane %v500, %v521
    %v524 = vunpack.c.l.s4 1966171168
    %v525 = vunpack.c.0.s8 %v524
    %v526 = vlaneseq
    %v527 = vshrl.u32 %v526, 7
    %v528 = vsub.s32 %v525, %v527
    %v529 = vrot.slane %v501, %v528
    %v530 = vcombine.high %v508, %v508
    %v531 = vcombine.high %v515, %v515
    %v532 = vcombine.high %v522, %v522
    %v533 = vcombine.high %v529, %v529
    %s542 = scalar_lea.vmem %s2, 4
    %543 = vst.msk [vmem:[%s542] ss:$8 sm:$0x3] %vm125, %v508
    %544 = vst.msk [vmem:[%s542] ss:$8 sm:$0x0] %vm125, %v508
    %s545 = scalar_lea.vmem %s2, 36
    %546 = vst.msk [vmem:[%s545] ss:$8 sm:$0x3] %vm125, %v522
    %547 = vst.msk [vmem:[%s545] ss:$8 sm:$0x0] %vm125, %v522
    %s548 = scalar_lea.vmem %s2, 68
    %549 = vst.msk [vmem:[%s548] ss:$8 sm:$0x3] %vm125, %v530
    %550 = vst.msk [vmem:[%s548] ss:$8 sm:$0x0] %vm125, %v530
    %s551 = scalar_lea.vmem %s2, 100
    %552 = vst.msk [vmem:[%s551] ss:$8 sm:$0x3] %vm125, %v532
    %553 = vst.msk [vmem:[%s551] ss:$8 sm:$0x0] %vm125, %v532
    %s554 = scalar_lea.vmem %s2, 132
    %555 = vst.msk [vmem:[%s554] ss:$8 sm:$0x3] %vm125, %v515
    %556 = vst.msk [vmem:[%s554] ss:$8 sm:$0x0] %vm125, %v515
    %s557 = scalar_lea.vmem %s2, 164
    %558 = vst.msk [vmem:[%s557] ss:$8 sm:$0x3] %vm125, %v529
    %559 = vst.msk [vmem:[%s557] ss:$8 sm:$0x0] %vm125, %v529
    %s560 = scalar_lea.vmem %s2, 196
    %561 = vst.msk [vmem:[%s560] ss:$8 sm:$0x3] %vm125, %v531
    %562 = vst.msk [vmem:[%s560] ss:$8 sm:$0x0] %vm125, %v531
    %s563 = scalar_lea.vmem %s2, 228
    %564 = vst.msk [vmem:[%s563] ss:$8 sm:$0x3] %vm125, %v533
    %565 = vst.msk [vmem:[%s563] ss:$8 sm:$0x0] %vm125, %v533
    %566 = vrot.lane.b32.xlu0 %v37, 126
    %v567 = vpop.permute.xlu0 %566
    %568 = vrot.lane.b32.xlu0 %v38, 126
    %v569 = vpop.permute.xlu0 %568
    %vm570 = vcmp.lt.s32.totalorder %v44, 126
    %v571 = vsel %vm570, %v567, %v569
    %v572 = vsel %vm570, %v569, %v567
    %s573 = scalar_lea.vmem [#allocation4], 5
    %v574 = vld [vmem:[%s573] ss:$8 sm:$0x3]
    %v576 = vlaneseq
    %v577 = vshrl.u32 %v576, 7
    %v578 = vsub.s32 0, %v577
    %v579 = vrot.slane %v574, %v578
    %v580 = vlaneseq
    %v581 = vshrl.u32 %v580, 7
    %v582 = vsub.s32 1, %v581
    %v583 = vrot.slane %v574, %v582
    %v586 = vmul.f32 %v571, %v579
    %v587 = vmul.f32 %v572, %v583
    %v590 = vcombine.low %v586, %v587
    %v591 = vcombine.high %v586, %v587
    %v593 = vunpack.c.l.s4 1966171168
    %v594 = vunpack.c.0.s8 %v593
    %v595 = vlaneseq
    %v596 = vshrl.u32 %v595, 7
    %v597 = vsub.s32 %v594, %v596
    %v598 = vrot.slane %v590, %v597
    %v600 = vunpack.c.l.s4 1966171168
    %v601 = vunpack.c.0.s8 %v600
    %v602 = vlaneseq
    %v603 = vshrl.u32 %v602, 7
    %v604 = vsub.s32 %v601, %v603
    %v605 = vrot.slane %v591, %v604
    %v606 = vcombine.high %v598, %v598
    %v607 = vcombine.high %v605, %v605
    %v609 = vunpack.c.l.s4 1966171168
    %v610 = vunpack.c.0.s8 %v609
    %v611 = vlaneseq
    %v612 = vshrl.u32 %v611, 7
    %v613 = vsub.s32 %v610, %v612
    %v614 = vrot.slane %v598, %v613
    %v616 = vunpack.c.l.s4 1966171168
    %v617 = vunpack.c.0.s8 %v616
    %v618 = vlaneseq
    %v619 = vshrl.u32 %v618, 7
    %v620 = vsub.s32 %v617, %v619
    %v621 = vrot.slane %v605, %v620
    %v623 = vunpack.c.l.s4 1966171168
    %v624 = vunpack.c.0.s8 %v623
    %v625 = vlaneseq
    %v626 = vshrl.u32 %v625, 7
    %v627 = vsub.s32 %v624, %v626
    %v628 = vrot.slane %v606, %v627
    %v630 = vunpack.c.l.s4 1966171168
    %v631 = vunpack.c.0.s8 %v630
    %v632 = vlaneseq
    %v633 = vshrl.u32 %v632, 7
    %v634 = vsub.s32 %v631, %v633
    %v635 = vrot.slane %v607, %v634
    %v636 = vcombine.high %v614, %v614
    %v637 = vcombine.high %v621, %v621
    %v638 = vcombine.high %v628, %v628
    %v639 = vcombine.high %v635, %v635
    %s648 = scalar_lea.vmem %s2, 5
    %649 = vst.msk [vmem:[%s648] ss:$8 sm:$0x3] %vm125, %v614
    %650 = vst.msk [vmem:[%s648] ss:$8 sm:$0x0] %vm125, %v614
    %s651 = scalar_lea.vmem %s2, 37
    %652 = vst.msk [vmem:[%s651] ss:$8 sm:$0x3] %vm125, %v628
    %653 = vst.msk [vmem:[%s651] ss:$8 sm:$0x0] %vm125, %v628
    %s654 = scalar_lea.vmem %s2, 69
    %655 = vst.msk [vmem:[%s654] ss:$8 sm:$0x3] %vm125, %v636
    %656 = vst.msk [vmem:[%s654] ss:$8 sm:$0x0] %vm125, %v636
    %s657 = scalar_lea.vmem %s2, 101
    %658 = vst.msk [vmem:[%s657] ss:$8 sm:$0x3] %vm125, %v638
    %659 = vst.msk [vmem:[%s657] ss:$8 sm:$0x0] %vm125, %v638
    %s660 = scalar_lea.vmem %s2, 133
    %661 = vst.msk [vmem:[%s660] ss:$8 sm:$0x3] %vm125, %v621
    %662 = vst.msk [vmem:[%s660] ss:$8 sm:$0x0] %vm125, %v621
    %s663 = scalar_lea.vmem %s2, 165
    %664 = vst.msk [vmem:[%s663] ss:$8 sm:$0x3] %vm125, %v635
    %665 = vst.msk [vmem:[%s663] ss:$8 sm:$0x0] %vm125, %v635
    %s666 = scalar_lea.vmem %s2, 197
    %667 = vst.msk [vmem:[%s666] ss:$8 sm:$0x3] %vm125, %v637
    %668 = vst.msk [vmem:[%s666] ss:$8 sm:$0x0] %vm125, %v637
    %s669 = scalar_lea.vmem %s2, 229
    %670 = vst.msk [vmem:[%s669] ss:$8 sm:$0x3] %vm125, %v639
    %671 = vst.msk [vmem:[%s669] ss:$8 sm:$0x0] %vm125, %v639
    %672 = vrot.lane.b32.xlu0 %v37, 98
    %v673 = vpop.permute.xlu0 %672
    %674 = vrot.lane.b32.xlu0 %v38, 98
    %v675 = vpop.permute.xlu0 %674
    %vm676 = vcmp.lt.s32.totalorder %v44, 98
    %v677 = vsel %vm676, %v673, %v675
    %v678 = vsel %vm676, %v675, %v673
    %s679 = scalar_lea.vmem [#allocation4], 6
    %v680 = vld [vmem:[%s679] ss:$8 sm:$0x3]
    %v682 = vlaneseq
    %v683 = vshrl.u32 %v682, 7
    %v684 = vsub.s32 0, %v683
    %v685 = vrot.slane %v680, %v684
    %v686 = vlaneseq
    %v687 = vshrl.u32 %v686, 7
    %v688 = vsub.s32 1, %v687
    %v689 = vrot.slane %v680, %v688
    %v692 = vmul.f32 %v677, %v685
    %v693 = vmul.f32 %v678, %v689
    %v696 = vcombine.low %v692, %v693
    %v697 = vcombine.high %v692, %v693
    %v699 = vunpack.c.l.s4 1966171168
    %v700 = vunpack.c.0.s8 %v699
    %v701 = vlaneseq
    %v702 = vshrl.u32 %v701, 7
    %v703 = vsub.s32 %v700, %v702
    %v704 = vrot.slane %v696, %v703
    %v706 = vunpack.c.l.s4 1966171168
    %v707 = vunpack.c.0.s8 %v706
    %v708 = vlaneseq
    %v709 = vshrl.u32 %v708, 7
    %v710 = vsub.s32 %v707, %v709
    %v711 = vrot.slane %v697, %v710
    %v712 = vcombine.high %v704, %v704
    %v713 = vcombine.high %v711, %v711
    %v715 = vunpack.c.l.s4 1966171168
    %v716 = vunpack.c.0.s8 %v715
    %v717 = vlaneseq
    %v718 = vshrl.u32 %v717, 7
    %v719 = vsub.s32 %v716, %v718
    %v720 = vrot.slane %v704, %v719
    %v722 = vunpack.c.l.s4 1966171168
    %v723 = vunpack.c.0.s8 %v722
    %v724 = vlaneseq
    %v725 = vshrl.u32 %v724, 7
    %v726 = vsub.s32 %v723, %v725
    %v727 = vrot.slane %v711, %v726
    %v729 = vunpack.c.l.s4 1966171168
    %v730 = vunpack.c.0.s8 %v729
    %v731 = vlaneseq
    %v732 = vshrl.u32 %v731, 7
    %v733 = vsub.s32 %v730, %v732
    %v734 = vrot.slane %v712, %v733
    %v736 = vunpack.c.l.s4 1966171168
    %v737 = vunpack.c.0.s8 %v736
    %v738 = vlaneseq
    %v739 = vshrl.u32 %v738, 7
    %v740 = vsub.s32 %v737, %v739
    %v741 = vrot.slane %v713, %v740
    %v742 = vcombine.high %v720, %v720
    %v743 = vcombine.high %v727, %v727
    %v744 = vcombine.high %v734, %v734
    %v745 = vcombine.high %v741, %v741
    %s754 = scalar_lea.vmem %s2, 6
    %755 = vst.msk [vmem:[%s754] ss:$8 sm:$0x3] %vm125, %v720
    %756 = vst.msk [vmem:[%s754] ss:$8 sm:$0x0] %vm125, %v720
    %s757 = scalar_lea.vmem %s2, 38
    %758 = vst.msk [vmem:[%s757] ss:$8 sm:$0x3] %vm125, %v734
    %759 = vst.msk [vmem:[%s757] ss:$8 sm:$0x0] %vm125, %v734
    %s760 = scalar_lea.vmem %s2, 70
    %761 = vst.msk [vmem:[%s760] ss:$8 sm:$0x3] %vm125, %v742
    %762 = vst.msk [vmem:[%s760] ss:$8 sm:$0x0] %vm125, %v742
    %s763 = scalar_lea.vmem %s2, 102
    %764 = vst.msk [vmem:[%s763] ss:$8 sm:$0x3] %vm125, %v744
    %765 = vst.msk [vmem:[%s763] ss:$8 sm:$0x0] %vm125, %v744
    %s766 = scalar_lea.vmem %s2, 134
    %767 = vst.msk [vmem:[%s766] ss:$8 sm:$0x3] %vm125, %v727
    %768 = vst.msk [vmem:[%s766] ss:$8 sm:$0x0] %vm125, %v727
    %s769 = scalar_lea.vmem %s2, 166
    %770 = vst.msk [vmem:[%s769] ss:$8 sm:$0x3] %vm125, %v741
    %771 = vst.msk [vmem:[%s769] ss:$8 sm:$0x0] %vm125, %v741
    %s772 = scalar_lea.vmem %s2, 198
    %773 = vst.msk [vmem:[%s772] ss:$8 sm:$0x3] %vm125, %v743
    %774 = vst.msk [vmem:[%s772] ss:$8 sm:$0x0] %vm125, %v743
    %s775 = scalar_lea.vmem %s2, 230
    %776 = vst.msk [vmem:[%s775] ss:$8 sm:$0x3] %vm125, %v745
    %777 = vst.msk [vmem:[%s775] ss:$8 sm:$0x0] %vm125, %v745
    %778 = vrot.lane.b32.xlu0 %v37, 96
    %v779 = vpop.permute.xlu0 %778
    %780 = vrot.lane.b32.xlu0 %v38, 96
    %v781 = vpop.permute.xlu0 %780
    %vm782 = vcmp.lt.s32.totalorder %v44, 96
    %v783 = vsel %vm782, %v779, %v781
    %v784 = vsel %vm782, %v781, %v779
    %s785 = scalar_lea.vmem [#allocation4], 7
    %v786 = vld [vmem:[%s785] ss:$8 sm:$0x3]
    %v788 = vlaneseq
    %v789 = vshrl.u32 %v788, 7
    %v790 = vsub.s32 0, %v789
    %v791 = vrot.slane %v786, %v790
    %v792 = vlaneseq
    %v793 = vshrl.u32 %v792, 7
    %v794 = vsub.s32 1, %v793
    %v795 = vrot.slane %v786, %v794
    %v798 = vmul.f32 %v783, %v791
    %v799 = vmul.f32 %v784, %v795
    %v802 = vcombine.low %v798, %v799
    %v803 = vcombine.high %v798, %v799
    %v805 = vunpack.c.l.s4 1966171168
    %v806 = vunpack.c.0.s8 %v805
    %v807 = vlaneseq
    %v808 = vshrl.u32 %v807, 7
    %v809 = vsub.s32 %v806, %v808
    %v810 = vrot.slane %v802, %v809
    %v812 = vunpack.c.l.s4 1966171168
    %v813 = vunpack.c.0.s8 %v812
    %v814 = vlaneseq
    %v815 = vshrl.u32 %v814, 7
    %v816 = vsub.s32 %v813, %v815
    %v817 = vrot.slane %v803, %v816
    %v818 = vcombine.high %v810, %v810
    %v819 = vcombine.high %v817, %v817
    %v821 = vunpack.c.l.s4 1966171168
    %v822 = vunpack.c.0.s8 %v821
    %v823 = vlaneseq
    %v824 = vshrl.u32 %v823, 7
    %v825 = vsub.s32 %v822, %v824
    %v826 = vrot.slane %v810, %v825
    %v828 = vunpack.c.l.s4 1966171168
    %v829 = vunpack.c.0.s8 %v828
    %v830 = vlaneseq
    %v831 = vshrl.u32 %v830, 7
    %v832 = vsub.s32 %v829, %v831
    %v833 = vrot.slane %v817, %v832
    %v835 = vunpack.c.l.s4 1966171168
    %v836 = vunpack.c.0.s8 %v835
    %v837 = vlaneseq
    %v838 = vshrl.u32 %v837, 7
    %v839 = vsub.s32 %v836, %v838
    %v840 = vrot.slane %v818, %v839
    %v842 = vunpack.c.l.s4 1966171168
    %v843 = vunpack.c.0.s8 %v842
    %v844 = vlaneseq
    %v845 = vshrl.u32 %v844, 7
    %v846 = vsub.s32 %v843, %v845
    %v847 = vrot.slane %v819, %v846
    %v848 = vcombine.high %v826, %v826
    %v849 = vcombine.high %v833, %v833
    %v850 = vcombine.high %v840, %v840
    %v851 = vcombine.high %v847, %v847
    %s860 = scalar_lea.vmem %s2, 7
    %861 = vst.msk [vmem:[%s860] ss:$8 sm:$0x3] %vm125, %v826
    %862 = vst.msk [vmem:[%s860] ss:$8 sm:$0x0] %vm125, %v826
    %s863 = scalar_lea.vmem %s2, 39
    %864 = vst.msk [vmem:[%s863] ss:$8 sm:$0x3] %vm125, %v840
    %865 = vst.msk [vmem:[%s863] ss:$8 sm:$0x0] %vm125, %v840
    %s866 = scalar_lea.vmem %s2, 71
    %867 = vst.msk [vmem:[%s866] ss:$8 sm:$0x3] %vm125, %v848
    %868 = vst.msk [vmem:[%s866] ss:$8 sm:$0x0] %vm125, %v848
    %s869 = scalar_lea.vmem %s2, 103
    %870 = vst.msk [vmem:[%s869] ss:$8 sm:$0x3] %vm125, %v850
    %871 = vst.msk [vmem:[%s869] ss:$8 sm:$0x0] %vm125, %v850
    %s872 = scalar_lea.vmem %s2, 135
    %873 = vst.msk [vmem:[%s872] ss:$8 sm:$0x3] %vm125, %v833
    %874 = vst.msk [vmem:[%s872] ss:$8 sm:$0x0] %vm125, %v833
    %s875 = scalar_lea.vmem %s2, 167
    %876 = vst.msk [vmem:[%s875] ss:$8 sm:$0x3] %vm125, %v847
    %877 = vst.msk [vmem:[%s875] ss:$8 sm:$0x0] %vm125, %v847
    %s878 = scalar_lea.vmem %s2, 199
    %879 = vst.msk [vmem:[%s878] ss:$8 sm:$0x3] %vm125, %v849
    %880 = vst.msk [vmem:[%s878] ss:$8 sm:$0x0] %vm125, %v849
    %s881 = scalar_lea.vmem %s2, 231
    %882 = vst.msk [vmem:[%s881] ss:$8 sm:$0x3] %vm125, %v851
    %883 = vst.msk [vmem:[%s881] ss:$8 sm:$0x0] %vm125, %v851
    %884 = vrot.lane.b32.xlu0 %v37, 94
    %v885 = vpop.permute.xlu0 %884
    %886 = vrot.lane.b32.xlu0 %v38, 94
    %v887 = vpop.permute.xlu0 %886
    %vm888 = vcmp.lt.s32.totalorder %v44, 94
    %v889 = vsel %vm888, %v885, %v887
    %v890 = vsel %vm888, %v887, %v885
    %s891 = scalar_lea.vmem [#allocation4], 16
    %v892 = vld [vmem:[%s891] ss:$8 sm:$0x3]
    %v894 = vlaneseq
    %v895 = vshrl.u32 %v894, 7
    %v896 = vsub.s32 0, %v895
    %v897 = vrot.slane %v892, %v896
    %v898 = vlaneseq
    %v899 = vshrl.u32 %v898, 7
    %v900 = vsub.s32 1, %v899
    %v901 = vrot.slane %v892, %v900
    %v904 = vmul.f32 %v889, %v897
    %v905 = vmul.f32 %v890, %v901
    %v908 = vcombine.low %v904, %v905
    %v909 = vcombine.high %v904, %v905
    %v911 = vunpack.c.l.s4 1966171168
    %v912 = vunpack.c.0.s8 %v911
    %v913 = vlaneseq
    %v914 = vshrl.u32 %v913, 7
    %v915 = vsub.s32 %v912, %v914
    %v916 = vrot.slane %v908, %v915
    %v918 = vunpack.c.l.s4 1966171168
    %v919 = vunpack.c.0.s8 %v918
    %v920 = vlaneseq
    %v921 = vshrl.u32 %v920, 7
    %v922 = vsub.s32 %v919, %v921
    %v923 = vrot.slane %v909, %v922
    %v924 = vcombine.high %v916, %v916
    %v925 = vcombine.high %v923, %v923
    %v927 = vunpack.c.l.s4 1966171168
    %v928 = vunpack.c.0.s8 %v927
    %v929 = vlaneseq
    %v930 = vshrl.u32 %v929, 7
    %v931 = vsub.s32 %v928, %v930
    %v932 = vrot.slane %v916, %v931
    %v934 = vunpack.c.l.s4 1966171168
    %v935 = vunpack.c.0.s8 %v934
    %v936 = vlaneseq
    %v937 = vshrl.u32 %v936, 7
    %v938 = vsub.s32 %v935, %v937
    %v939 = vrot.slane %v923, %v938
    %v941 = vunpack.c.l.s4 1966171168
    %v942 = vunpack.c.0.s8 %v941
    %v943 = vlaneseq
    %v944 = vshrl.u32 %v943, 7
    %v945 = vsub.s32 %v942, %v944
    %v946 = vrot.slane %v924, %v945
    %v948 = vunpack.c.l.s4 1966171168
    %v949 = vunpack.c.0.s8 %v948
    %v950 = vlaneseq
    %v951 = vshrl.u32 %v950, 7
    %v952 = vsub.s32 %v949, %v951
    %v953 = vrot.slane %v925, %v952
    %v954 = vcombine.high %v932, %v932
    %v955 = vcombine.high %v939, %v939
    %v956 = vcombine.high %v946, %v946
    %v957 = vcombine.high %v953, %v953
    %s966 = scalar_lea.vmem %s2, 16
    %967 = vst.msk [vmem:[%s966] ss:$8 sm:$0x3] %vm125, %v932
    %968 = vst.msk [vmem:[%s966] ss:$8 sm:$0x0] %vm125, %v932
    %s969 = scalar_lea.vmem %s2, 48
    %970 = vst.msk [vmem:[%s969] ss:$8 sm:$0x3] %vm125, %v946
    %971 = vst.msk [vmem:[%s969] ss:$8 sm:$0x0] %vm125, %v946
    %s972 = scalar_lea.vmem %s2, 80
    %973 = vst.msk [vmem:[%s972] ss:$8 sm:$0x3] %vm125, %v954
    %974 = vst.msk [vmem:[%s972] ss:$8 sm:$0x0] %vm125, %v954
    %s975 = scalar_lea.vmem %s2, 112
    %976 = vst.msk [vmem:[%s975] ss:$8 sm:$0x3] %vm125, %v956
    %977 = vst.msk [vmem:[%s975] ss:$8 sm:$0x0] %vm125, %v956
    %s978 = scalar_lea.vmem %s2, 144
    %979 = vst.msk [vmem:[%s978] ss:$8 sm:$0x3] %vm125, %v939
    %980 = vst.msk [vmem:[%s978] ss:$8 sm:$0x0] %vm125, %v939
    %s981 = scalar_lea.vmem %s2, 176
    %982 = vst.msk [vmem:[%s981] ss:$8 sm:$0x3] %vm125, %v953
    %983 = vst.msk [vmem:[%s981] ss:$8 sm:$0x0] %vm125, %v953
    %s984 = scalar_lea.vmem %s2, 208
    %985 = vst.msk [vmem:[%s984] ss:$8 sm:$0x3] %vm125, %v955
    %986 = vst.msk [vmem:[%s984] ss:$8 sm:$0x0] %vm125, %v955
    %s987 = scalar_lea.vmem %s2, 240
    %988 = vst.msk [vmem:[%s987] ss:$8 sm:$0x3] %vm125, %v957
    %989 = vst.msk [vmem:[%s987] ss:$8 sm:$0x0] %vm125, %v957
    // Predicated region
    $region18: #{tpu_custom_call.1} parent=1 // pred_check
      _
    $region19: #{tpu_custom_call.1} parent=1 // pred_check_branch
      %991 = sbr.rel (0) target = $region21
    $region20: #{tpu_custom_call.1} parent=1 // pred_region
      _
    $region21: #{tpu_custom_call.1} parent=1 // pred_fallthru
      _
    // Predicated region
    $region22: #{tpu_custom_call.1} parent=1 // pred_check
      _
    $region23: #{tpu_custom_call.1} parent=1 // pred_check_branch
      %993 = sbr.rel (0) target = $region25
    $region24: #{tpu_custom_call.1} parent=1 // pred_region
      _
    $region25: #{tpu_custom_call.1} parent=1 // pred_fallthru
      _
    %994 = vsyncpa [#allocation3], 1
    %995 = vsyncpa [#allocation5], 1

</llo_original>
